<compile_context>
chip_gen: v7x
topology: tpu7x:2x2x1
jax: 0.10.0
libtpu: 0.0.40
codegen_flags: <defaults>
</compile_context>

<pallas_src>
import jax
import jax.numpy as jnp
from jax.experimental import pallas as pl
from jax.experimental.pallas import tpu as pltpu


def _round_up(x, m):
    return ((x + m - 1) // m) * m


# ----------------------------------------------------------------------------
# One-time parameter preparation (hoisted out of the forward path).
# TODO(synk): training-mode BatchNorm (batch-statistics update) is not
# implemented; eval-mode running stats are folded into the conv weights.
# ----------------------------------------------------------------------------
def prepare_value_head_params(params, *, matmul_dtype=jnp.bfloat16, eps=1e-5):
    scale = params["bn_gamma"] / jnp.sqrt(params["bn_var"] + eps)          # (F,)
    shift = (params["conv_b"] - params["bn_mean"]) * scale + params["bn_beta"]
    ws = (params["conv_w"] * scale[:, None]).astype(jnp.float32)           # (F, C)
    hid = params["w1"].shape[0]
    return {
        "ws": ws,                                                 # (F, C)   SMEM scalars
        "shift": shift.astype(jnp.float32),                       # (F,)     SMEM scalars
        "w1T": params["w1"].T.astype(matmul_dtype),               # (Din, Hid) MXU operand
        "b1": params["b1"].reshape(1, hid).astype(jnp.float32),   # (1, Hid)
        "w2": params["w2"].reshape(1, hid).astype(jnp.float32),   # (1, Hid)
        "b2": params["b2"].reshape(1).astype(jnp.float32),        # (1,)     SMEM scalar
    }


# ----------------------------------------------------------------------------
# Fused forward: conv1x1+BN+ReLU -> Linear+ReLU -> Linear+tanh
# Batch on sublanes; one batch tile per grid step.
# ----------------------------------------------------------------------------
def value_head_forward(x_nchw, prepped, *, batch_tile=2048):
    """x_nchw: (B, C, H, W), f32 or bf16. Returns (B, 1) f32 value in [-1, 1].

    NOTE: pass x already in bf16 from the trunk to halve the kernel's HBM read;
    we deliberately do NOT cast here (a wrapper-side cast adds its own HBM pass).
    """
    B, C, H, W = x_nchw.shape
    HW = H * W
    CHW = C * HW
    F, c_w = prepped["ws"].shape
    assert c_w == C
    Din, Hid = prepped["w1T"].shape
    assert Din == F * HW

    # --- batch tiling: rows pad only to a sublane/tile multiple --------------
    B8 = _round_up(B, 8)
    if B8 > batch_tile:
        Bt = batch_tile                         # multiple of 256 for the MXU
        B_pad = _round_up(B8, Bt)
    elif B8 >= 1024:
        # Split a single big tile in two so both v7x TensorCores get work.
        Bt = _round_up((B8 + 1) // 2, 8)
        B_pad = 2 * Bt
    else:
        Bt = B8
        B_pad = B8
    grid = (B_pad // Bt,)

    x2 = x_nchw.reshape(B, CHW)                 # free view: NCHW is contiguous
    if B_pad != B:
        x2 = jnp.pad(x2, ((0, B_pad - B), (0, 0)))

    def kernel(x_ref, w1T_ref, b1_ref, w2_ref, ws_ref, shift_ref, b2_ref, o_ref):
        # x_ref:     (Bt, CHW)   activations, batch on sublanes (dtype as given)
        # w1T_ref:   (Din, Hid)  dense-1 weight, pre-transposed (bf16 or f32)
        # b1_ref:    (1, Hid)    dense-1 bias (f32)
        # w2_ref:    (1, Hid)    dense-2 weight row (f32)
        # ws_ref:    (F, C)      BN-folded 1x1 conv weights  (SMEM scalars)
        # shift_ref: (F,)        folded conv-bias + BN shift (SMEM scalars)
        # b2_ref:    (1,)        dense-2 bias                (SMEM scalar)
        # o_ref:     (Bt, 1)     tanh value output (f32)
        x = x_ref[...].astype(jnp.float32)                      # (Bt, CHW)

        # 1x1 conv + BN + ReLU as an F*C-term VPU channel mix (no MXU, no
        # 64x-inflated matrix). Column order f*HW + hw == torch reshape(B,-1).
        cols = []
        for f in range(F):
            acc = x[:, 0:HW] * ws_ref[f, 0]
            for c in range(1, C):
                acc = acc + x[:, c * HW:(c + 1) * HW] * ws_ref[f, c]
            cols.append(acc + shift_ref[f])
        y = jnp.maximum(jnp.concatenate(cols, axis=1), 0.0)     # (Bt, Din) f32

        # Dense 1 + ReLU on the MXU (bf16 operands by default, f32 accumulate).
        h = jnp.dot(y.astype(w1T_ref.dtype), w1T_ref[...],
                    preferred_element_type=jnp.float32) + b1_ref[...]
        h = jnp.maximum(h, 0.0)                                 # (Bt, Hid) f32

        # Dense 2 (N=1): VPU multiply + lane reduce (skip a second MXU pass),
        # tanh on the EUP.
        v = jnp.sum(h * w2_ref[...], axis=1, keepdims=True) + b2_ref[0]
        o_ref[...] = jnp.tanh(v)                                # (Bt, 1)

    flops = 2 * B_pad * (C * HW * F + Din * Hid + Hid)
    bytes_accessed = (B_pad * CHW * x2.dtype.itemsize
                      + Din * Hid * prepped["w1T"].dtype.itemsize
                      + B_pad * 4)
    cost = pl.CostEstimate(flops=flops, transcendentals=B_pad,
                           bytes_accessed=bytes_accessed)

    out = pl.pallas_call(
        kernel,
        out_shape=jax.ShapeDtypeStruct((B_pad, 1), jnp.float32),
        grid=grid,
        in_specs=[
            pl.BlockSpec((Bt, CHW), lambda i: (i, 0)),              # x tile
            pl.BlockSpec((Din, Hid), lambda i: (0, 0)),             # w1T
            pl.BlockSpec((1, Hid), lambda i: (0, 0)),               # b1
            pl.BlockSpec((1, Hid), lambda i: (0, 0)),               # w2
            pl.BlockSpec(memory_space=pltpu.MemorySpace.SMEM),      # ws (F, C)
            pl.BlockSpec(memory_space=pltpu.MemorySpace.SMEM),      # shift (F,)
            pl.BlockSpec(memory_space=pltpu.MemorySpace.SMEM),      # b2 (1,)
        ],
        out_specs=pl.BlockSpec((Bt, 1), lambda i: (i, 0)),
        compiler_params=pltpu.CompilerParams(
            dimension_semantics=("parallel",),       # batch tiles -> both TCs on v7x
            vmem_limit_bytes=32 * 1024 * 1024),      # covers f32 x at Bt=2048 on v5e
        cost_estimate=cost,
    )(x2, prepped["w1T"], prepped["b1"], prepped["w2"],
      prepped["ws"], prepped["shift"], prepped["b2"])

    return out[:B]                                   # (B, 1)


# ----------------------------------------------------------------------------
# Pure-JAX reference (for correctness check)
# ----------------------------------------------------------------------------
def value_head_ref(x_nchw, params):
    B, C, H, W = x_nchw.shape
    F = params["conv_w"].shape[0]
    eps = 1e-5
    y = jnp.einsum("fc,bchw->bfhw", params["conv_w"], x_nchw) \
        + params["conv_b"].reshape(1, F, 1, 1)
    scale = params["bn_gamma"] / jnp.sqrt(params["bn_var"] + eps)
    y = (y - params["bn_mean"].reshape(1, F, 1, 1)) * scale.reshape(1, F, 1, 1) \
        + params["bn_beta"].reshape(1, F, 1, 1)
    y = jnp.maximum(y, 0.0)
    y = y.reshape(B, -1)
    h = jnp.maximum(y @ params["w1"].T + params["b1"], 0.0)
    v = jnp.tanh(h @ params["w2"].T + params["b2"])
    return v


# ----------------------------------------------------------------------------
# Deterministic parameter init (synthetic, PyTorch-like shapes)
# ----------------------------------------------------------------------------
def init_params(key, feature_dim, n_filters, in_dense_size, hidden):
    Din = n_filters * in_dense_size * in_dense_size
    ks = jax.random.split(key, 6)
    return {
        # Conv2d(feature_dim, n_filters, kernel_size=1) -> weight (F, C)
        "conv_w": jax.random.uniform(ks[0], (n_filters, feature_dim),
                                     jnp.float32, -0.3, 0.3),
        "conv_b": jax.random.uniform(ks[1], (n_filters,),
                                     jnp.float32, -0.1, 0.1),
        # BatchNorm2d(n_filters) params + running stats (eval mode)
        "bn_gamma": jnp.ones((n_filters,), jnp.float32),
        "bn_beta": jnp.zeros((n_filters,), jnp.float32),
        "bn_mean": jnp.zeros((n_filters,), jnp.float32),
        "bn_var": jnp.ones((n_filters,), jnp.float32),
        # Linear(Din, hidden)
        "w1": jax.random.uniform(ks[2], (hidden, Din), jnp.float32, -0.05, 0.05),
        "b1": jax.random.uniform(ks[3], (hidden,), jnp.float32, -0.05, 0.05),
        # Linear(hidden, 1)
        "w2": jax.random.uniform(ks[4], (1, hidden), jnp.float32, -0.1, 0.1),
        "b2": jax.random.uniform(ks[5], (1,), jnp.float32, -0.1, 0.1),
    }


if __name__ == "__main__":
    # Small shapes: batch=2, feature_dim=4, board 8x8, 4 value filters, hidden=32
    B, C, H, W = 2, 4, 8, 8
    n_value_filters = 4
    dense_hidden_size = 32
    in_dense_size = H  # 1x1 conv, stride 1, pad 0 -> spatial unchanged

    key = jax.random.PRNGKey(0)
    kx, kp = jax.random.split(key)
    x = jax.random.normal(kx, (B, C, H, W), jnp.float32)
    params = init_params(kp, C, n_value_filters, in_dense_size, dense_hidden_size)
    ref = value_head_ref(x, params)

    # Exact-semantics path (f32 dense weights on the MXU): tight tolerance.
    prep_f32 = prepare_value_head_params(params, matmul_dtype=jnp.float32)
    out_f32 = jax.block_until_ready(value_head_forward(x, prep_f32))
    assert out_f32.shape == (B, 1)
    assert jnp.allclose(out_f32, ref, atol=1e-4, rtol=1e-4), (out_f32, ref)

    # Default fast path (bf16 dense weights, f32 accumulation): looser tolerance.
    prep_bf16 = prepare_value_head_params(params)
    out_bf16 = jax.block_until_ready(value_head_forward(x, prep_bf16))
    assert out_bf16.shape == (B, 1)
    assert jnp.allclose(out_bf16, ref, atol=1e-2, rtol=1e-2), (out_bf16, ref)

    print("KERNEL_OK")
</pallas_src>

<mosaic_0001>
module attributes {stable_mosaic.version = 11 : i64} {
  func.func @kernel(%arg0: i32, %arg1: memref<8x256xf32, #tpu.memory_space<vmem>>, %arg2: memref<256x32xf32, #tpu.memory_space<vmem>>, %arg3: memref<1x32xf32, #tpu.memory_space<vmem>>, %arg4: memref<1x32xf32, #tpu.memory_space<vmem>>, %arg5: memref<4x4xf32, #tpu.memory_space<smem>>, %arg6: memref<4xf32, #tpu.memory_space<smem>>, %arg7: memref<1xf32, #tpu.memory_space<smem>>, %arg8: memref<8x1xf32, #tpu.memory_space<vmem>>) attributes {dimension_semantics = [#tpu.dimension_semantics<parallel>], iteration_bounds = array<i64: 1>, scalar_prefetch = 0 : i64, scratch_operands = 0 : i64, tpu.core_type = #tpu.core_type<tc>, window_params = [{transform_indices = @transform_0, window_bounds = array<i64: 8, 256>}, {pipeline_mode = #tpu.pipeline_mode<synchronous>, transform_indices = @transform_1, window_bounds = array<i64: 256, 32>}, {pipeline_mode = #tpu.pipeline_mode<synchronous>, transform_indices = @transform_2, window_bounds = array<i64: 1, 32>}, {pipeline_mode = #tpu.pipeline_mode<synchronous>, transform_indices = @transform_3, window_bounds = array<i64: 1, 32>}, {transform_indices = @transform_4, window_bounds = array<i64: 4, 4>}, {transform_indices = @transform_5, window_bounds = array<i64: 4>}, {transform_indices = @transform_6, window_bounds = array<i64: 1>}, {transform_indices = @transform_7, window_bounds = array<i64: 8, 1>}]} {
    %c0 = arith.constant 0 : index
    %c0_0 = arith.constant 0 : index
    %0 = vector.load %arg1[%c0, %c0_0] : memref<8x256xf32, #tpu.memory_space<vmem>>, vector<8x256xf32>
    %1 = vector.extract_strided_slice %0 {offsets = [0, 0], sizes = [8, 64], strides = [1, 1]} : vector<8x256xf32> to vector<8x64xf32>
    %c0_1 = arith.constant 0 : index
    %c0_2 = arith.constant 0 : index
    %2 = memref.load %arg5[%c0_1, %c0_2] : memref<4x4xf32, #tpu.memory_space<smem>>
    %3 = vector.broadcast %2 : f32 to vector<8x64xf32>
    %4 = arith.mulf %1, %3 : vector<8x64xf32>
    %5 = vector.extract_strided_slice %0 {offsets = [0, 64], sizes = [8, 64], strides = [1, 1]} : vector<8x256xf32> to vector<8x64xf32>
    %c0_3 = arith.constant 0 : index
    %c1 = arith.constant 1 : index
    %6 = memref.load %arg5[%c0_3, %c1] : memref<4x4xf32, #tpu.memory_space<smem>>
    %7 = vector.broadcast %6 : f32 to vector<8x64xf32>
    %8 = arith.mulf %5, %7 : vector<8x64xf32>
    %9 = arith.addf %4, %8 : vector<8x64xf32>
    %10 = vector.extract_strided_slice %0 {offsets = [0, 128], sizes = [8, 64], strides = [1, 1]} : vector<8x256xf32> to vector<8x64xf32>
    %c0_4 = arith.constant 0 : index
    %c2 = arith.constant 2 : index
    %11 = memref.load %arg5[%c0_4, %c2] : memref<4x4xf32, #tpu.memory_space<smem>>
    %12 = vector.broadcast %11 : f32 to vector<8x64xf32>
    %13 = arith.mulf %10, %12 : vector<8x64xf32>
    %14 = arith.addf %9, %13 : vector<8x64xf32>
    %15 = vector.extract_strided_slice %0 {offsets = [0, 192], sizes = [8, 64], strides = [1, 1]} : vector<8x256xf32> to vector<8x64xf32>
    %c0_5 = arith.constant 0 : index
    %c3 = arith.constant 3 : index
    %16 = memref.load %arg5[%c0_5, %c3] : memref<4x4xf32, #tpu.memory_space<smem>>
    %17 = vector.broadcast %16 : f32 to vector<8x64xf32>
    %18 = arith.mulf %15, %17 : vector<8x64xf32>
    %19 = arith.addf %14, %18 : vector<8x64xf32>
    %c0_6 = arith.constant 0 : index
    %20 = memref.load %arg6[%c0_6] : memref<4xf32, #tpu.memory_space<smem>>
    %21 = vector.broadcast %20 : f32 to vector<8x64xf32>
    %22 = arith.addf %19, %21 : vector<8x64xf32>
    %23 = vector.extract_strided_slice %0 {offsets = [0, 0], sizes = [8, 64], strides = [1, 1]} : vector<8x256xf32> to vector<8x64xf32>
    %c1_7 = arith.constant 1 : index
    %c0_8 = arith.constant 0 : index
    %24 = memref.load %arg5[%c1_7, %c0_8] : memref<4x4xf32, #tpu.memory_space<smem>>
    %25 = vector.broadcast %24 : f32 to vector<8x64xf32>
    %26 = arith.mulf %23, %25 : vector<8x64xf32>
    %27 = vector.extract_strided_slice %0 {offsets = [0, 64], sizes = [8, 64], strides = [1, 1]} : vector<8x256xf32> to vector<8x64xf32>
    %c1_9 = arith.constant 1 : index
    %c1_10 = arith.constant 1 : index
    %28 = memref.load %arg5[%c1_9, %c1_10] : memref<4x4xf32, #tpu.memory_space<smem>>
    %29 = vector.broadcast %28 : f32 to vector<8x64xf32>
    %30 = arith.mulf %27, %29 : vector<8x64xf32>
    %31 = arith.addf %26, %30 : vector<8x64xf32>
    %32 = vector.extract_strided_slice %0 {offsets = [0, 128], sizes = [8, 64], strides = [1, 1]} : vector<8x256xf32> to vector<8x64xf32>
    %c1_11 = arith.constant 1 : index
    %c2_12 = arith.constant 2 : index
    %33 = memref.load %arg5[%c1_11, %c2_12] : memref<4x4xf32, #tpu.memory_space<smem>>
    %34 = vector.broadcast %33 : f32 to vector<8x64xf32>
    %35 = arith.mulf %32, %34 : vector<8x64xf32>
    %36 = arith.addf %31, %35 : vector<8x64xf32>
    %37 = vector.extract_strided_slice %0 {offsets = [0, 192], sizes = [8, 64], strides = [1, 1]} : vector<8x256xf32> to vector<8x64xf32>
    %c1_13 = arith.constant 1 : index
    %c3_14 = arith.constant 3 : index
    %38 = memref.load %arg5[%c1_13, %c3_14] : memref<4x4xf32, #tpu.memory_space<smem>>
    %39 = vector.broadcast %38 : f32 to vector<8x64xf32>
    %40 = arith.mulf %37, %39 : vector<8x64xf32>
    %41 = arith.addf %36, %40 : vector<8x64xf32>
    %c1_15 = arith.constant 1 : index
    %42 = memref.load %arg6[%c1_15] : memref<4xf32, #tpu.memory_space<smem>>
    %43 = vector.broadcast %42 : f32 to vector<8x64xf32>
    %44 = arith.addf %41, %43 : vector<8x64xf32>
    %45 = vector.extract_strided_slice %0 {offsets = [0, 0], sizes = [8, 64], strides = [1, 1]} : vector<8x256xf32> to vector<8x64xf32>
    %c2_16 = arith.constant 2 : index
    %c0_17 = arith.constant 0 : index
    %46 = memref.load %arg5[%c2_16, %c0_17] : memref<4x4xf32, #tpu.memory_space<smem>>
    %47 = vector.broadcast %46 : f32 to vector<8x64xf32>
    %48 = arith.mulf %45, %47 : vector<8x64xf32>
    %49 = vector.extract_strided_slice %0 {offsets = [0, 64], sizes = [8, 64], strides = [1, 1]} : vector<8x256xf32> to vector<8x64xf32>
    %c2_18 = arith.constant 2 : index
    %c1_19 = arith.constant 1 : index
    %50 = memref.load %arg5[%c2_18, %c1_19] : memref<4x4xf32, #tpu.memory_space<smem>>
    %51 = vector.broadcast %50 : f32 to vector<8x64xf32>
    %52 = arith.mulf %49, %51 : vector<8x64xf32>
    %53 = arith.addf %48, %52 : vector<8x64xf32>
    %54 = vector.extract_strided_slice %0 {offsets = [0, 128], sizes = [8, 64], strides = [1, 1]} : vector<8x256xf32> to vector<8x64xf32>
    %c2_20 = arith.constant 2 : index
    %c2_21 = arith.constant 2 : index
    %55 = memref.load %arg5[%c2_20, %c2_21] : memref<4x4xf32, #tpu.memory_space<smem>>
    %56 = vector.broadcast %55 : f32 to vector<8x64xf32>
    %57 = arith.mulf %54, %56 : vector<8x64xf32>
    %58 = arith.addf %53, %57 : vector<8x64xf32>
    %59 = vector.extract_strided_slice %0 {offsets = [0, 192], sizes = [8, 64], strides = [1, 1]} : vector<8x256xf32> to vector<8x64xf32>
    %c2_22 = arith.constant 2 : index
    %c3_23 = arith.constant 3 : index
    %60 = memref.load %arg5[%c2_22, %c3_23] : memref<4x4xf32, #tpu.memory_space<smem>>
    %61 = vector.broadcast %60 : f32 to vector<8x64xf32>
    %62 = arith.mulf %59, %61 : vector<8x64xf32>
    %63 = arith.addf %58, %62 : vector<8x64xf32>
    %c2_24 = arith.constant 2 : index
    %64 = memref.load %arg6[%c2_24] : memref<4xf32, #tpu.memory_space<smem>>
    %65 = vector.broadcast %64 : f32 to vector<8x64xf32>
    %66 = arith.addf %63, %65 : vector<8x64xf32>
    %67 = vector.extract_strided_slice %0 {offsets = [0, 0], sizes = [8, 64], strides = [1, 1]} : vector<8x256xf32> to vector<8x64xf32>
    %c3_25 = arith.constant 3 : index
    %c0_26 = arith.constant 0 : index
    %68 = memref.load %arg5[%c3_25, %c0_26] : memref<4x4xf32, #tpu.memory_space<smem>>
    %69 = vector.broadcast %68 : f32 to vector<8x64xf32>
    %70 = arith.mulf %67, %69 : vector<8x64xf32>
    %71 = vector.extract_strided_slice %0 {offsets = [0, 64], sizes = [8, 64], strides = [1, 1]} : vector<8x256xf32> to vector<8x64xf32>
    %c3_27 = arith.constant 3 : index
    %c1_28 = arith.constant 1 : index
    %72 = memref.load %arg5[%c3_27, %c1_28] : memref<4x4xf32, #tpu.memory_space<smem>>
    %73 = vector.broadcast %72 : f32 to vector<8x64xf32>
    %74 = arith.mulf %71, %73 : vector<8x64xf32>
    %75 = arith.addf %70, %74 : vector<8x64xf32>
    %76 = vector.extract_strided_slice %0 {offsets = [0, 128], sizes = [8, 64], strides = [1, 1]} : vector<8x256xf32> to vector<8x64xf32>
    %c3_29 = arith.constant 3 : index
    %c2_30 = arith.constant 2 : index
    %77 = memref.load %arg5[%c3_29, %c2_30] : memref<4x4xf32, #tpu.memory_space<smem>>
    %78 = vector.broadcast %77 : f32 to vector<8x64xf32>
    %79 = arith.mulf %76, %78 : vector<8x64xf32>
    %80 = arith.addf %75, %79 : vector<8x64xf32>
    %81 = vector.extract_strided_slice %0 {offsets = [0, 192], sizes = [8, 64], strides = [1, 1]} : vector<8x256xf32> to vector<8x64xf32>
    %c3_31 = arith.constant 3 : index
    %c3_32 = arith.constant 3 : index
    %82 = memref.load %arg5[%c3_31, %c3_32] : memref<4x4xf32, #tpu.memory_space<smem>>
    %83 = vector.broadcast %82 : f32 to vector<8x64xf32>
    %84 = arith.mulf %81, %83 : vector<8x64xf32>
    %85 = arith.addf %80, %84 : vector<8x64xf32>
    %c3_33 = arith.constant 3 : index
    %86 = memref.load %arg6[%c3_33] : memref<4xf32, #tpu.memory_space<smem>>
    %87 = vector.broadcast %86 : f32 to vector<8x64xf32>
    %88 = arith.addf %85, %87 : vector<8x64xf32>
    %89 = tpu.concatenate %22, %44, %66, %88 in 1 : vector<8x64xf32>, vector<8x64xf32>, vector<8x64xf32>, vector<8x64xf32> -> vector<8x256xf32>
    %cst = arith.constant 0.000000e+00 : f32
    %90 = vector.broadcast %cst : f32 to vector<8x256xf32>
    %91 = arith.maximumf %89, %90 : vector<8x256xf32>
    %c0_34 = arith.constant 0 : index
    %c0_35 = arith.constant 0 : index
    %92 = vector.load %arg2[%c0_34, %c0_35] : memref<256x32xf32, #tpu.memory_space<vmem>>, vector<256x32xf32>
    %cst_36 = arith.constant dense<0.000000e+00> : vector<8x32xf32>
    %93 = tpu.matmul %91, %92, %cst_36 {dimension_numbers = #tpu.dot_dimension_numbers<[1], [0], [0], [1], [0, 0, 1, 1], [], []>} : vector<8x256xf32>, vector<256x32xf32>, vector<8x32xf32> -> vector<8x32xf32>
    %c0_37 = arith.constant 0 : index
    %c0_38 = arith.constant 0 : index
    %94 = vector.load %arg3[%c0_37, %c0_38] : memref<1x32xf32, #tpu.memory_space<vmem>>, vector<1x32xf32>
    %95 = vector.broadcast %94 : vector<1x32xf32> to vector<8x32xf32>
    %96 = arith.addf %93, %95 : vector<8x32xf32>
    %cst_39 = arith.constant 0.000000e+00 : f32
    %97 = vector.broadcast %cst_39 : f32 to vector<8x32xf32>
    %98 = arith.maximumf %96, %97 : vector<8x32xf32>
    %c0_40 = arith.constant 0 : index
    %c0_41 = arith.constant 0 : index
    %99 = vector.load %arg4[%c0_40, %c0_41] : memref<1x32xf32, #tpu.memory_space<vmem>>, vector<1x32xf32>
    %100 = vector.broadcast %99 : vector<1x32xf32> to vector<8x32xf32>
    %101 = arith.mulf %98, %100 : vector<8x32xf32>
    %cst_42 = arith.constant dense<0.000000e+00> : vector<8xf32>
    %102 = vector.multi_reduction <add>, %101, %cst_42 [1] : vector<8x32xf32> to vector<8xf32>
    %103 = vector.shape_cast %102 : vector<8xf32> to vector<8x1xf32>
    %c0_43 = arith.constant 0 : index
    %104 = memref.load %arg7[%c0_43] : memref<1xf32, #tpu.memory_space<smem>>
    %105 = vector.broadcast %104 : f32 to vector<8x1xf32>
    %106 = arith.addf %103, %105 : vector<8x1xf32>
    %107 = math.tanh %106 : vector<8x1xf32>
    %c0_44 = arith.constant 0 : index
    %c0_45 = arith.constant 0 : index
    %108 = vector.load %arg8[%c0_44, %c0_45] : memref<8x1xf32, #tpu.memory_space<vmem>>, vector<8x1xf32>
    tpu.vector_store %arg8[%c0_44, %c0_45], %107 {strides = array<i32>} : memref<8x1xf32, #tpu.memory_space<vmem>>, vector<8x1xf32>,
    return
  }
  func.func @transform_0(%arg0: i32) -> (i32, i32) {
    %c0_i32 = arith.constant 0 : i32
    %c0_i32_0 = arith.constant 0 : i32
    return %arg0, %c0_i32 : i32, i32
  }
  func.func @transform_1(%arg0: i32) -> (i32, i32) {
    %c0_i32 = arith.constant 0 : i32
    %c0_i32_0 = arith.constant 0 : i32
    %c0_i32_1 = arith.constant 0 : i32
    return %c0_i32, %c0_i32_0 : i32, i32
  }
  func.func @transform_2(%arg0: i32) -> (i32, i32) {
    %c0_i32 = arith.constant 0 : i32
    %c0_i32_0 = arith.constant 0 : i32
    %c0_i32_1 = arith.constant 0 : i32
    return %c0_i32, %c0_i32_0 : i32, i32
  }
  func.func @transform_3(%arg0: i32) -> (i32, i32) {
    %c0_i32 = arith.constant 0 : i32
    %c0_i32_0 = arith.constant 0 : i32
    %c0_i32_1 = arith.constant 0 : i32
    return %c0_i32, %c0_i32_0 : i32, i32
  }
  func.func @transform_4(%arg0: i32) -> (i32, i32) {
    %c0_i32 = arith.constant 0 : i32
    %c0_i32_0 = arith.constant 0 : i32
    %c0_i32_1 = arith.constant 0 : i32
    return %c0_i32, %c0_i32_0 : i32, i32
  }
  func.func @transform_5(%arg0: i32) -> i32 {
    %c0_i32 = arith.constant 0 : i32
    %c0_i32_0 = arith.constant 0 : i32
    return %c0_i32 : i32
  }
  func.func @transform_6(%arg0: i32) -> i32 {
    %c0_i32 = arith.constant 0 : i32
    %c0_i32_0 = arith.constant 0 : i32
    return %c0_i32 : i32
  }
  func.func @transform_7(%arg0: i32) -> (i32, i32) {
    %c0_i32 = arith.constant 0 : i32
    %c0_i32_0 = arith.constant 0 : i32
    return %arg0, %c0_i32 : i32, i32
  }
}

</mosaic_0001>

<llo_original>
// kernel: tpu_custom_call.1
$region0: #{tpu_custom_call.1}
  #allocation0 [shape = 'u32[]', space=smem, size = 0x4, offset = 0x4, fixed_abs, tag = 'smem constant byte address 0x4 - core index']
  #allocation1 [shape = 'u32[144,128]{1,0:T(1,128)}', space=vmem, size = 0x12000, scoped, tag = 'internal scratch']
  #allocation2 [shape = 'f32[1]{0:T(128)S(6)}', space=smem, size = 0x200, scoped, tag = 'scoped memory for tpu_custom_call.1']
  %s0 = inlined_call_operand.vmem [shape: f32[8,256], index: 0, kind: input, shape index: {}]
  %s1 = inlined_call_operand.vmem [shape: f32[256,32], index: 1, kind: input, shape index: {}]
  %s2 = inlined_call_operand.vmem [shape: f32[1,32], index: 2, kind: input, shape index: {}]
  %s3 = inlined_call_operand.vmem [shape: f32[1,32], index: 3, kind: input, shape index: {}]
  %s4 = inlined_call_operand.vmem [shape: f32[4,4], index: 4, kind: input, shape index: {}]
  %s5 = inlined_call_operand.vmem [shape: f32[4], index: 5, kind: input, shape index: {}]
  %s6 = inlined_call_operand.<no memory space> [shape: f32[1], index: 6, kind: input, shape index: {}]
  %s7 = inlined_call_operand.vmem [shape: f32[8,1], index: 7, kind: output, shape index: {}]
  %s8 = sld [smem:[#allocation0]]
  $region46: #{tpu_custom_call.1} parent=0
    _
  %s10 = ssub.s32 1, %s8
  %s11 = scalar_select 0, %s10, %s8
  %12 = sst [smem:[#allocation2]] %s6
  $region1: #{tpu_custom_call.1} parent=0
    #allocation3 [shape = 'u8[2048]{0}', space=smem, size = 0x800, scoped, tag = 'input window, operand 4, single buffered']
    #allocation4 [shape = 's32[1]{0}', space=sflag, size = 0x4, scoped, tag = 'scoped memory for tpu_custom_call.1']
    #allocation5 [shape = 'u8[512]{0}', space=smem, size = 0x200, scoped, tag = 'input window, operand 5, single buffered']
    #allocation6 [shape = 's32[1]{0}', space=sflag, size = 0x4, scoped, tag = 'scoped memory for tpu_custom_call.1']
    %13 = vsyncpa [#allocation4], 0
    %14 = vsyncpa [#allocation6], 0
    // Predicated region
    $region2: #{tpu_custom_call.1} parent=1 // pred_check
      _
    $region3: #{tpu_custom_call.1} parent=1 // pred_check_branch
      %16 = sbr.rel (0) target = $region5
    $region4: #{tpu_custom_call.1} parent=1 // pred_region
      _
    $region5: #{tpu_custom_call.1} parent=1 // pred_fallthru
      _
    // Predicated region
    $region6: #{tpu_custom_call.1} parent=1 // pred_check
      _
    $region7: #{tpu_custom_call.1} parent=1 // pred_check_branch
      %18 = sbr.rel (0) target = $region9
    $region8: #{tpu_custom_call.1} parent=1 // pred_region
      _
    $region9: #{tpu_custom_call.1} parent=1 // pred_fallthru
      _
    // Predicated region
    $region10: #{tpu_custom_call.1} parent=1 // pred_check
      _
    $region11: #{tpu_custom_call.1} parent=1 // pred_check_branch
      %20 = sbr.rel (0) target = $region13
    $region12: #{tpu_custom_call.1} parent=1 // pred_region
      _
    $region13: #{tpu_custom_call.1} parent=1 // pred_fallthru
      _
    // Predicated region
    $region14: #{tpu_custom_call.1} parent=1 // pred_check
      _
    $region15: #{tpu_custom_call.1} parent=1 // pred_check_branch
      %22 = sbr.rel (0) target = $region17
    $region16: #{tpu_custom_call.1} parent=1 // pred_region
      _
    $region17: #{tpu_custom_call.1} parent=1 // pred_fallthru
      _
    // Predicated region
    $region18: #{tpu_custom_call.1} parent=1 // pred_check
      _
    $region19: #{tpu_custom_call.1} parent=1 // pred_check_branch
      %24 = sbr.rel (0) target = $region21
    $region20: #{tpu_custom_call.1} parent=1 // pred_region
      %s26 = ssub.s32 64, 64
      %27 = vsyncadd [#allocation4], %s26
      %s29 = sshll.u32 %s4, 4
      %s30 = int_to_ptr.vmem [resolvable:$true] %s29
      %32 = dma.vmem_to_smem %s30, 64, [#allocation3], [#allocation4]
    $region21: #{tpu_custom_call.1} parent=1 // pred_fallthru
      _
    // Predicated region
    $region22: #{tpu_custom_call.1} parent=1 // pred_check
      _
    $region23: #{tpu_custom_call.1} parent=1 // pred_check_branch
      %34 = sbr.rel (0) target = $region25
    $region24: #{tpu_custom_call.1} parent=1 // pred_region
      %s36 = ssub.s32 16, 16
      %37 = vsyncadd [#allocation6], %s36
      %s39 = sshll.u32 %s5, 4
      %s40 = int_to_ptr.vmem [resolvable:$true] %s39
      %42 = dma.vmem_to_smem %s40, 16, [#allocation5], [#allocation6]
    $region25: #{tpu_custom_call.1} parent=1 // pred_fallthru
      _
    // Predicated region
    $region26: #{tpu_custom_call.1} parent=1 // pred_check
      _
    $region27: #{tpu_custom_call.1} parent=1 // pred_check_branch
      %44 = sbr.rel (0) target = $region29
    $region28: #{tpu_custom_call.1} parent=1 // pred_region
      _
    $region29: #{tpu_custom_call.1} parent=1 // pred_fallthru
      _
    // Predicated region
    $region30: #{tpu_custom_call.1} parent=1 // pred_check
      _
    $region31: #{tpu_custom_call.1} parent=1 // pred_check_branch
      %46 = sbr.rel (0) target = $region33
    $region32: #{tpu_custom_call.1} parent=1 // pred_region
      %47 = dma.done [#allocation4], 64
    $region33: #{tpu_custom_call.1} parent=1 // pred_fallthru
      _
    // Predicated region
    $region34: #{tpu_custom_call.1} parent=1 // pred_check
      _
    $region35: #{tpu_custom_call.1} parent=1 // pred_check_branch
      %49 = sbr.rel (0) target = $region37
    $region36: #{tpu_custom_call.1} parent=1 // pred_region
      %50 = dma.done [#allocation6], 16
    $region37: #{tpu_custom_call.1} parent=1 // pred_fallthru
      _
    %51 = sfence
    %v52 = vld [vmem:[%s0] sm:$0xff]
    %v53 = vld [vmem:[%s0 + $0x8] sm:$0xff]
    %s54 = sld [smem:[#allocation3]]
    %v55 = vstv %s54
    %v56 = vmul.f32 %v52, %v55
    %s57 = sld [smem:[#allocation3 + $0x1]]
    %v58 = vstv %s57
    %v59 = vmul.f32 %v52, %v58
    %61 = vrot.lane.b32.xlu0 %v59, 64
    %v62 = vpop.permute.xlu0 %61
    %v64 = vadd.f32 %v56, %v62
    %s65 = sld [smem:[#allocation3 + $0x2]]
    %v66 = vstv %s65
    %v67 = vmul.f32 %v53, %v66
    %v68 = vadd.f32 %v64, %v67
    %s69 = sld [smem:[#allocation3 + $0x3]]
    %v70 = vstv %s69
    %v71 = vmul.f32 %v53, %v70
    %73 = vrot.lane.b32.xlu0 %v71, 64
    %v74 = vpop.permute.xlu0 %73
    %v76 = vadd.f32 %v68, %v74
    %s77 = sld [smem:[#allocation5]]
    %v78 = vstv %s77
    %v79 = vadd.f32 %v76, %v78
    %s80 = sld [smem:[#allocation3 + $0x80]]
    %v81 = vstv %s80
    %v82 = vmul.f32 %v52, %v81
    %s83 = sld [smem:[#allocation3 + $0x81]]
    %v84 = vstv %s83
    %v85 = vmul.f32 %v52, %v84
    %87 = vrot.lane.b32.xlu0 %v85, 64
    %v88 = vpop.permute.xlu0 %87
    %v90 = vadd.f32 %v82, %v88
    %s91 = sld [smem:[#allocation3 + $0x82]]
    %v92 = vstv %s91
    %v93 = vmul.f32 %v53, %v92
    %v94 = vadd.f32 %v90, %v93
    %s95 = sld [smem:[#allocation3 + $0x83]]
    %v96 = vstv %s95
    %v97 = vmul.f32 %v53, %v96
    %99 = vrot.lane.b32.xlu0 %v97, 64
    %v100 = vpop.permute.xlu0 %99
    %v102 = vadd.f32 %v94, %v100
    %s103 = sld [smem:[#allocation5 + $0x1]]
    %v104 = vstv %s103
    %v105 = vadd.f32 %v102, %v104
    %s106 = sld [smem:[#allocation3 + $0x100]]
    %v107 = vstv %s106
    %v108 = vmul.f32 %v52, %v107
    %s109 = sld [smem:[#allocation3 + $0x101]]
    %v110 = vstv %s109
    %v111 = vmul.f32 %v52, %v110
    %113 = vrot.lane.b32.xlu0 %v111, 64
    %v114 = vpop.permute.xlu0 %113
    %v116 = vadd.f32 %v108, %v114
    %s117 = sld [smem:[#allocation3 + $0x102]]
    %v118 = vstv %s117
    %v119 = vmul.f32 %v53, %v118
    %v120 = vadd.f32 %v116, %v119
    %s121 = sld [smem:[#allocation3 + $0x103]]
    %v122 = vstv %s121
    %v123 = vmul.f32 %v53, %v122
    %125 = vrot.lane.b32.xlu0 %v123, 64
    %v126 = vpop.permute.xlu0 %125
    %v128 = vadd.f32 %v120, %v126
    %s129 = sld [smem:[#allocation5 + $0x2]]
    %v130 = vstv %s129
    %v131 = vadd.f32 %v128, %v130
    %s132 = sld [smem:[#allocation3 + $0x180]]
    %v133 = vstv %s132
    %v134 = vmul.f32 %v52, %v133
    %s135 = sld [smem:[#allocation3 + $0x181]]
    %v136 = vstv %s135
    %v137 = vmul.f32 %v52, %v136
    %139 = vrot.lane.b32.xlu0 %v137, 64
    %v140 = vpop.permute.xlu0 %139
    %v142 = vadd.f32 %v134, %v140
    %s143 = sld [smem:[#allocation3 + $0x182]]
    %v144 = vstv %s143
    %v145 = vmul.f32 %v53, %v144
    %v146 = vadd.f32 %v142, %v145
    %s147 = sld [smem:[#allocation3 + $0x183]]
    %v148 = vstv %s147
    %v149 = vmul.f32 %v53, %v148
    %151 = vrot.lane.b32.xlu0 %v149, 64
    %v152 = vpop.permute.xlu0 %151
    %v154 = vadd.f32 %v146, %v152
    %s155 = sld [smem:[#allocation5 + $0x3]]
    %v156 = vstv %s155
    %v157 = vadd.f32 %v154, %v156
    %159 = vrot.lane.b32.xlu0 %v105, 64
    %v160 = vpop.permute.xlu0 %159
    %163 = vrot.lane.b32.xlu0 %v157, 64
    %v164 = vpop.permute.xlu0 %163
    %vm166 = vcmask 523264
    %v167 = vsel %vm166, %v79, %v160
    %v168 = vsel %vm166, %v131, %v164
    %v169 = vmax.f32 %v167, 0.0
    %v170 = vmax.f32 %v168, 0.0
    %v171 = vld [vmem:[%s1] sm:$0xff]
    %v172 = vld [vmem:[%s1 + $0x8] sm:$0xff]
    %v173 = vld [vmem:[%s1 + $0x10] sm:$0xff]
    %v174 = vld [vmem:[%s1 + $0x18] sm:$0xff]
    %v175 = vld [vmem:[%s1 + $0x20] sm:$0xff]
    %v176 = vld [vmem:[%s1 + $0x28] sm:$0xff]
    %v177 = vld [vmem:[%s1 + $0x30] sm:$0xff]
    %v178 = vld [vmem:[%s1 + $0x38] sm:$0xff]
    %v179 = vld [vmem:[%s1 + $0x40] sm:$0xff]
    %v180 = vld [vmem:[%s1 + $0x48] sm:$0xff]
    %v181 = vld [vmem:[%s1 + $0x50] sm:$0xff]
    %v182 = vld [vmem:[%s1 + $0x58] sm:$0xff]
    %v183 = vld [vmem:[%s1 + $0x60] sm:$0xff]
    %v184 = vld [vmem:[%s1 + $0x68] sm:$0xff]
    %v185 = vld [vmem:[%s1 + $0x70] sm:$0xff]
    %v186 = vld [vmem:[%s1 + $0x78] sm:$0xff]
    %v187 = vld [vmem:[%s1 + $0x80] sm:$0xff]
    %v188 = vld [vmem:[%s1 + $0x88] sm:$0xff]
    %v189 = vld [vmem:[%s1 + $0x90] sm:$0xff]
    %v190 = vld [vmem:[%s1 + $0x98] sm:$0xff]
    %v191 = vld [vmem:[%s1 + $0xa0] sm:$0xff]
    %v192 = vld [vmem:[%s1 + $0xa8] sm:$0xff]
    %v193 = vld [vmem:[%s1 + $0xb0] sm:$0xff]
    %v194 = vld [vmem:[%s1 + $0xb8] sm:$0xff]
    %v195 = vld [vmem:[%s1 + $0xc0] sm:$0xff]
    %v196 = vld [vmem:[%s1 + $0xc8] sm:$0xff]
    %v197 = vld [vmem:[%s1 + $0xd0] sm:$0xff]
    %v198 = vld [vmem:[%s1 + $0xd8] sm:$0xff]
    %v199 = vld [vmem:[%s1 + $0xe0] sm:$0xff]
    %v200 = vld [vmem:[%s1 + $0xe8] sm:$0xff]
    %v201 = vld [vmem:[%s1 + $0xf0] sm:$0xff]
    %v202 = vld [vmem:[%s1 + $0xf8] sm:$0xff]
    %v203 = vld [vmem:[%s2] sm:$0x1]
    %v205 = vlaneseq
    %v206 = vshrl.u32 %v205, 7
    %v207 = vsub.s32 0, %v206
    %v208 = vrot.slane %v203, %v207
    %210 = vmatprep.subr.mxu0 0.0
    %211 = vmatpush1.msra.mxu0 %v171
    %212 = vmatprep.subr.mxu0 0.0
    %213 = vmatpush1.msra.mxu0 %v172
    %214 = vmatprep.subr.mxu0 0.0
    %215 = vmatpush1.msra.mxu0 %v173
    %216 = vmatprep.subr.mxu0 0.0
    %217 = vmatpush1.msra.mxu0 %v174
    %218 = vmatprep.subr.mxu0 0.0
    %219 = vmatpush1.msra.mxu0 %v175
    %220 = vmatprep.subr.mxu0 0.0
    %221 = vmatpush1.msra.mxu0 %v176
    %222 = vmatprep.subr.mxu0 0.0
    %223 = vmatpush1.msra.mxu0 %v177
    %224 = vmatprep.subr.mxu0 0.0
    %225 = vmatpush1.msra.mxu0 %v178
    %226 = vmatprep.subr.mxu0 0.0
    %227 = vmatpush1.msra.mxu0 %v179
    %228 = vmatprep.subr.mxu0 0.0
    %229 = vmatpush1.msra.mxu0 %v180
    %230 = vmatprep.subr.mxu0 0.0
    %231 = vmatpush1.msra.mxu0 %v181
    %232 = vmatprep.subr.mxu0 0.0
    %233 = vmatpush1.msra.mxu0 %v182
    %234 = vmatprep.subr.mxu0 0.0
    %235 = vmatpush1.msra.mxu0 %v183
    %236 = vmatprep.subr.mxu0 0.0
    %237 = vmatpush1.msra.mxu0 %v184
    %238 = vmatprep.subr.mxu0 0.0
    %239 = vmatpush1.msra.mxu0 %v185
    %240 = vmatprep.subr.mxu0 0.0
    %241 = vmatpush1.msra.mxu0 %v186
    %242 = vmatprep.subr.mxu0 0.0
    %243 = vmatpush1.msra.mxu0 %v187
    %244 = vmatprep.subr.mxu0 0.0
    %245 = vmatpush1.msra.mxu0 %v188
    %246 = vmatprep.subr.mxu0 0.0
    %247 = vmatpush1.msra.mxu0 %v189
    %248 = vmatprep.subr.mxu0 0.0
    %249 = vmatpush1.msra.mxu0 %v190
    %250 = vmatprep.subr.mxu0 0.0
    %251 = vmatpush1.msra.mxu0 %v191
    %252 = vmatprep.subr.mxu0 0.0
    %253 = vmatpush1.msra.mxu0 %v192
    %254 = vmatprep.subr.mxu0 0.0
    %255 = vmatpush1.msra.mxu0 %v193
    %256 = vmatprep.subr.mxu0 0.0
    %257 = vmatpush1.msra.mxu0 %v194
    %258 = vmatprep.subr.mxu0 0.0
    %259 = vmatpush1.msra.mxu0 %v195
    %260 = vmatprep.subr.mxu0 0.0
    %261 = vmatpush1.msra.mxu0 %v196
    %262 = vmatprep.subr.mxu0 0.0
    %263 = vmatpush1.msra.mxu0 %v197
    %264 = vmatprep.subr.mxu0 0.0
    %265 = vmatpush1.msra.mxu0 %v198
    %266 = vmatprep.subr.mxu0 0.0
    %267 = vmatpush1.msra.mxu0 %v199
    %268 = vmatprep.subr.mxu0 0.0
    %269 = vmatpush1.msra.mxu0 %v200
    %270 = vmatprep.subr.mxu0 0.0
    %271 = vmatpush1.msra.mxu0 %v201
    %272 = vmatprep.subr.mxu0 0.0
    %273 = vmatpush1.msra.mxu0 %v202
    %274 = vmatprep.mubr.f32.mxu0 %v170
    %275 = vmatmul.mubr.f32.gmra.mrb[0].mxu0 %v169
    %v276 = vpop.f32.mrb[0].mxu0
    %v277 = vadd.f32 %v208, %v276
    %v278 = vpop.f32.mrb[0].mxu0
    %279 = vdwg.mxu0
    %v280 = vmax.f32 %v277, 0.0
    %v281 = vld [vmem:[%s3] sm:$0x1]
    %v283 = vlaneseq
    %v284 = vshrl.u32 %v283, 7
    %v285 = vsub.s32 0, %v284
    %v286 = vrot.slane %v281, %v285
    %v288 = vmul.f32 %v280, %v286
    %vm289 = vcmask 261120
    %v290 = vsel %vm289, %v288, 0.0
    %291 = vadd.xlane.f32.xlu0 %v290
    %v292 = vpop.xlane.xlu0 %291
    %s293 = sld [smem:[#allocation2]]
    %v294 = vstv %s293
    %v295 = vadd.f32 %v292, %v294
    %v296 = vtanh.pop %v295
    %vm297 = vcmask 7168
    %298 = vst.msk [vmem:[%s7] sm:$0xff] %vm297, %v296
    // Predicated region
    $region38: #{tpu_custom_call.1} parent=1 // pred_check
      _
    $region39: #{tpu_custom_call.1} parent=1 // pred_check_branch
      %300 = sbr.rel (0) target = $region41
    $region40: #{tpu_custom_call.1} parent=1 // pred_region
      _
    $region41: #{tpu_custom_call.1} parent=1 // pred_fallthru
      _
    // Predicated region
    $region42: #{tpu_custom_call.1} parent=1 // pred_check
      _
    $region43: #{tpu_custom_call.1} parent=1 // pred_check_branch
      %302 = sbr.rel (0) target = $region45
    $region44: #{tpu_custom_call.1} parent=1 // pred_region
      _
    $region45: #{tpu_custom_call.1} parent=1 // pred_fallthru
      _
    %303 = vsyncpa [#allocation4], 1
    %304 = vsyncpa [#allocation6], 1

</llo_original>
